<compile_context>
chip_gen: v5e
topology: v5e:2x2
jax: 0.10.0
libtpu: 0.0.40
codegen_flags: <defaults>
</compile_context>

<pallas_src>
import math

import jax
import jax.numpy as jnp
from jax.experimental import pallas as pl
from jax.experimental.pallas import tpu as pltpu


def mlp4_kernel(x_ref, w1_ref, b1_ref, w2_ref, b2_ref,
                w3_ref, b3_ref, w4_ref, b4_ref, o_ref):
    # x arrives as f32 (single HBM read); cast to bf16 on the VPU — free in a
    # DMA-bound regime — so the MXU sees bf16 operands with f32 accumulation.
    xb = x_ref[...].astype(w1_ref.dtype)

    # fc1 + ReLU
    h = jnp.dot(xb, w1_ref[...], preferred_element_type=jnp.float32)
    h = jnp.maximum(h + b1_ref[...], 0.0)
    # fc2 + ReLU
    h = jnp.dot(h.astype(w2_ref.dtype), w2_ref[...],
                preferred_element_type=jnp.float32)
    h = jnp.maximum(h + b2_ref[...], 0.0)
    # fc3 + ReLU
    h = jnp.dot(h.astype(w3_ref.dtype), w3_ref[...],
                preferred_element_type=jnp.float32)
    h = jnp.maximum(h + b3_ref[...], 0.0)
    # fc4 (lane-padded to 128 output columns; no activation)
    out = jnp.dot(h.astype(w4_ref.dtype), w4_ref[...],
                  preferred_element_type=jnp.float32)
    o_ref[...] = (out + b4_ref[...]).astype(o_ref.dtype)


def _round_up(v, m):
    return ((v + m - 1) // m) * m


def custom_mlp4_pallas(x, params, *, compute_dtype=jnp.bfloat16, max_tile_b=2048):
    """x: (B, C, H, W) float32. params: transposed (in, out) weights + biases.

    max_tile_b=2048 is safe for v7x (64 MiB VMEM); on 128 MiB parts
    (v5e/v6e) it can be raised to 4096 to further amortize per-step overhead.
    """
    B = x.shape[0]
    prod_size = math.prod(x.shape[1:])
    # Reshape only (metadata op) — no wrapper-side dtype cast; the kernel reads
    # f32 straight from HBM and casts in-register.
    x2d = x.reshape(B, prod_size)

    w1, b1 = params["w1"], params["b1"]
    w2, b2 = params["w2"], params["b2"]
    w3, b3 = params["w3"], params["b3"]
    w4, b4 = params["w4"], params["b4"]
    h1, h2, h3 = w1.shape[1], w2.shape[1], w3.shape[1]
    num_classes = w4.shape[1]

    # Lane-dense output: pad fc4 to a multiple of 128 output columns so the
    # final store is a full unmasked 128-lane write.
    padded_nc = max(128, pl.cdiv(num_classes, 128) * 128)
    w4p = jnp.pad(w4, ((0, 0), (0, padded_nc - num_classes)))
    b4p = jnp.pad(b4, (0, padded_nc - num_classes))

    # Matmul operands in bf16; biases stay f32 ((1, N) so everything is 2-D).
    w1c = w1.astype(compute_dtype)
    w2c = w2.astype(compute_dtype)
    w3c = w3.astype(compute_dtype)
    w4c = w4p.astype(compute_dtype)
    b1r = b1.reshape(1, -1).astype(jnp.float32)
    b2r = b2.reshape(1, -1).astype(jnp.float32)
    b3r = b3.reshape(1, -1).astype(jnp.float32)
    b4r = b4p.reshape(1, -1).astype(jnp.float32)

    # Batch tile:
    #  * tiny batch  -> one step with block == full batch dim (always legal);
    #  * larger batch -> sublane-aligned tile sized for >= 2 grid steps so the
    #    "parallel" batch axis feeds both TensorCores on v7x, capped at
    #    max_tile_b to amortize per-step overhead without blowing VMEM.
    if B <= 8:
        tile_b = B
    else:
        tile_b = min(max_tile_b, _round_up(pl.cdiv(B, 2), 8))
    grid = (pl.cdiv(B, tile_b),)

    x_spec = pl.BlockSpec((tile_b, prod_size), lambda i: (i, 0))
    out_spec = pl.BlockSpec((tile_b, padded_nc), lambda i: (i, 0))

    def resident(a):  # weights/biases: same block every step -> DMA'd once
        return pl.BlockSpec(a.shape, lambda i: (0,) * a.ndim)

    # VMEM budget: double-buffered f32 x tile + f32 out tile, double-buffered
    # resident params, plus slack. Clamped below ~56 MiB so it always fits
    # v7x's 64 MiB physical VMEM with headroom (v5e/v6e have 128 MiB).
    param_bytes = sum(int(a.size) * a.dtype.itemsize
                      for a in (w1c, w2c, w3c, w4c, b1r, b2r, b3r, b4r))
    tile_x_bytes = tile_b * prod_size * 4          # f32 input tile
    tile_out_bytes = tile_b * padded_nc * 4        # f32 output tile
    vmem_budget = (2 * tile_x_bytes + 2 * tile_out_bytes
                   + 2 * param_bytes + (4 << 20))
    vmem_limit = int(min(max(vmem_budget, 8 << 20), 56 << 20))

    # Advisory cost estimate: true flops (num_classes, not padded), and bytes
    # reflecting the single f32 read of x plus params and the padded f32 write.
    flops = 2 * B * (prod_size * h1 + h1 * h2 + h2 * h3 + h3 * num_classes)
    bytes_accessed = (B * prod_size * 4) + param_bytes + (B * padded_nc * 4)

    out = pl.pallas_call(
        mlp4_kernel,
        out_shape=jax.ShapeDtypeStruct((B, padded_nc), jnp.float32),
        grid=grid,
        in_specs=[x_spec,
                  resident(w1c), resident(b1r),
                  resident(w2c), resident(b2r),
                  resident(w3c), resident(b3r),
                  resident(w4c), resident(b4r)],
        out_specs=out_spec,
        compiler_params=pltpu.CompilerParams(
            dimension_semantics=("parallel",),
            vmem_limit_bytes=vmem_limit),
        cost_estimate=pl.CostEstimate(flops=flops, transcendentals=0,
                                      bytes_accessed=bytes_accessed),
    )(x2d, w1c, b1r, w2c, b2r, w3c, b3r, w4c, b4r)

    # Slice back to the true class count (exact; padded columns are zeros).
    return out[:, :num_classes]


def init_params(key, prod_size, num_classes=10):
    """Deterministic init; weights stored as (in, out) = nn.Linear weight.T."""
    dims = [(prod_size, 32), (32, 16), (16, 16), (16, num_classes)]
    params = {}
    for i, (fin, fout) in enumerate(dims, start=1):
        key, kw, kb = jax.random.split(key, 3)
        bound = 1.0 / math.sqrt(fin)  # matches nn.Linear default uniform bound
        params[f"w{i}"] = jax.random.uniform(
            kw, (fin, fout), jnp.float32, minval=-bound, maxval=bound)
        params[f"b{i}"] = jax.random.uniform(
            kb, (fout,), jnp.float32, minval=-bound, maxval=bound)
    return params


def reference_forward(x, params):
    """Plain-JAX f32 reference reproducing the PyTorch forward."""
    B = x.shape[0]
    h = x.reshape(B, -1)
    h = jnp.maximum(h @ params["w1"] + params["b1"], 0.0)
    h = jnp.maximum(h @ params["w2"] + params["b2"], 0.0)
    h = jnp.maximum(h @ params["w3"] + params["b3"], 0.0)
    return h @ params["w4"] + params["b4"]


if __name__ == "__main__":
    key = jax.random.PRNGKey(0)
    img_size = (4, 16, 16)                 # (C, H, W) -> prod_size = 1024
    batch = 2
    num_classes = 10
    prod_size = math.prod(img_size)

    key, kx, kp = jax.random.split(key, 3)
    x = jax.random.normal(kx, (batch,) + img_size, dtype=jnp.float32)
    params = init_params(kp, prod_size, num_classes)

    out = custom_mlp4_pallas(x, params)
    out = jax.block_until_ready(out)

    ref = reference_forward(x, params)
    assert out.shape == (batch, num_classes)
    # bf16 matmul operands with f32 accumulation -> loosened tolerance vs f32.
    assert jnp.allclose(out, ref, atol=5e-2, rtol=5e-2), (
        f"max abs err {jnp.max(jnp.abs(out - ref)):.4e}")

    print("KERNEL_OK")
</pallas_src>

<mosaic_0001>
module attributes {stable_mosaic.version = 11 : i64} {
  func.func @mlp4_kernel(%arg0: i32, %arg1: memref<2x1024xf32, #tpu.memory_space<vmem>>, %arg2: memref<1024x32xbf16, #tpu.memory_space<vmem>>, %arg3: memref<1x32xf32, #tpu.memory_space<vmem>>, %arg4: memref<32x16xbf16, #tpu.memory_space<vmem>>, %arg5: memref<1x16xf32, #tpu.memory_space<vmem>>, %arg6: memref<16x16xbf16, #tpu.memory_space<vmem>>, %arg7: memref<1x16xf32, #tpu.memory_space<vmem>>, %arg8: memref<16x128xbf16, #tpu.memory_space<vmem>>, %arg9: memref<1x128xf32, #tpu.memory_space<vmem>>, %arg10: memref<2x128xf32, #tpu.memory_space<vmem>>) attributes {dimension_semantics = [#tpu.dimension_semantics<parallel>], iteration_bounds = array<i64: 1>, scalar_prefetch = 0 : i64, scratch_operands = 0 : i64, tpu.core_type = #tpu.core_type<tc>, window_params = [{transform_indices = @transform_0, window_bounds = array<i64: 2, 1024>}, {pipeline_mode = #tpu.pipeline_mode<synchronous>, transform_indices = @transform_1, window_bounds = array<i64: 1024, 32>}, {pipeline_mode = #tpu.pipeline_mode<synchronous>, transform_indices = @transform_2, window_bounds = array<i64: 1, 32>}, {pipeline_mode = #tpu.pipeline_mode<synchronous>, transform_indices = @transform_3, window_bounds = array<i64: 32, 16>}, {pipeline_mode = #tpu.pipeline_mode<synchronous>, transform_indices = @transform_4, window_bounds = array<i64: 1, 16>}, {pipeline_mode = #tpu.pipeline_mode<synchronous>, transform_indices = @transform_5, window_bounds = array<i64: 16, 16>}, {pipeline_mode = #tpu.pipeline_mode<synchronous>, transform_indices = @transform_6, window_bounds = array<i64: 1, 16>}, {pipeline_mode = #tpu.pipeline_mode<synchronous>, transform_indices = @transform_7, window_bounds = array<i64: 16, 128>}, {pipeline_mode = #tpu.pipeline_mode<synchronous>, transform_indices = @transform_8, window_bounds = array<i64: 1, 128>}, {transform_indices = @transform_9, window_bounds = array<i64: 2, 128>}]} {
    %c0 = arith.constant 0 : index
    %c0_0 = arith.constant 0 : index
    %0 = vector.load %arg1[%c0, %c0_0] : memref<2x1024xf32, #tpu.memory_space<vmem>>, vector<2x1024xf32>
    %1 = arith.truncf %0 : vector<2x1024xf32> to vector<2x1024xbf16>
    %c0_1 = arith.constant 0 : index
    %c0_2 = arith.constant 0 : index
    %2 = vector.load %arg2[%c0_1, %c0_2] : memref<1024x32xbf16, #tpu.memory_space<vmem>>, vector<1024x32xbf16>
    %cst = arith.constant dense<0.000000e+00> : vector<2x32xf32>
    %3 = tpu.matmul %1, %2, %cst {dimension_numbers = #tpu.dot_dimension_numbers<[1], [0], [0], [1], [0, 0, 1, 1], [], []>} : vector<2x1024xbf16>, vector<1024x32xbf16>, vector<2x32xf32> -> vector<2x32xf32>
    %c0_3 = arith.constant 0 : index
    %c0_4 = arith.constant 0 : index
    %4 = vector.load %arg3[%c0_3, %c0_4] : memref<1x32xf32, #tpu.memory_space<vmem>>, vector<1x32xf32>
    %5 = vector.broadcast %4 : vector<1x32xf32> to vector<2x32xf32>
    %6 = arith.addf %3, %5 : vector<2x32xf32>
    %cst_5 = arith.constant 0.000000e+00 : f32
    %7 = vector.broadcast %cst_5 : f32 to vector<2x32xf32>
    %8 = arith.maximumf %6, %7 : vector<2x32xf32>
    %9 = arith.truncf %8 : vector<2x32xf32> to vector<2x32xbf16>
    %c0_6 = arith.constant 0 : index
    %c0_7 = arith.constant 0 : index
    %10 = vector.load %arg4[%c0_6, %c0_7] : memref<32x16xbf16, #tpu.memory_space<vmem>>, vector<32x16xbf16>
    %cst_8 = arith.constant dense<0.000000e+00> : vector<2x16xf32>
    %11 = tpu.matmul %9, %10, %cst_8 {dimension_numbers = #tpu.dot_dimension_numbers<[1], [0], [0], [1], [0, 0, 1, 1], [], []>} : vector<2x32xbf16>, vector<32x16xbf16>, vector<2x16xf32> -> vector<2x16xf32>
    %c0_9 = arith.constant 0 : index
    %c0_10 = arith.constant 0 : index
    %12 = vector.load %arg5[%c0_9, %c0_10] : memref<1x16xf32, #tpu.memory_space<vmem>>, vector<1x16xf32>
    %13 = vector.broadcast %12 : vector<1x16xf32> to vector<2x16xf32>
    %14 = arith.addf %11, %13 : vector<2x16xf32>
    %cst_11 = arith.constant 0.000000e+00 : f32
    %15 = vector.broadcast %cst_11 : f32 to vector<2x16xf32>
    %16 = arith.maximumf %14, %15 : vector<2x16xf32>
    %17 = arith.truncf %16 : vector<2x16xf32> to vector<2x16xbf16>
    %c0_12 = arith.constant 0 : index
    %c0_13 = arith.constant 0 : index
    %18 = vector.load %arg6[%c0_12, %c0_13] : memref<16x16xbf16, #tpu.memory_space<vmem>>, vector<16x16xbf16>
    %cst_14 = arith.constant dense<0.000000e+00> : vector<2x16xf32>
    %19 = tpu.matmul %17, %18, %cst_14 {dimension_numbers = #tpu.dot_dimension_numbers<[1], [0], [0], [1], [0, 0, 1, 1], [], []>} : vector<2x16xbf16>, vector<16x16xbf16>, vector<2x16xf32> -> vector<2x16xf32>
    %c0_15 = arith.constant 0 : index
    %c0_16 = arith.constant 0 : index
    %20 = vector.load %arg7[%c0_15, %c0_16] : memref<1x16xf32, #tpu.memory_space<vmem>>, vector<1x16xf32>
    %21 = vector.broadcast %20 : vector<1x16xf32> to vector<2x16xf32>
    %22 = arith.addf %19, %21 : vector<2x16xf32>
    %cst_17 = arith.constant 0.000000e+00 : f32
    %23 = vector.broadcast %cst_17 : f32 to vector<2x16xf32>
    %24 = arith.maximumf %22, %23 : vector<2x16xf32>
    %25 = arith.truncf %24 : vector<2x16xf32> to vector<2x16xbf16>
    %c0_18 = arith.constant 0 : index
    %c0_19 = arith.constant 0 : index
    %26 = vector.load %arg8[%c0_18, %c0_19] : memref<16x128xbf16, #tpu.memory_space<vmem>>, vector<16x128xbf16>
    %cst_20 = arith.constant dense<0.000000e+00> : vector<2x128xf32>
    %27 = tpu.matmul %25, %26, %cst_20 {dimension_numbers = #tpu.dot_dimension_numbers<[1], [0], [0], [1], [0, 0, 1, 1], [], []>} : vector<2x16xbf16>, vector<16x128xbf16>, vector<2x128xf32> -> vector<2x128xf32>
    %c0_21 = arith.constant 0 : index
    %c0_22 = arith.constant 0 : index
    %28 = vector.load %arg9[%c0_21, %c0_22] : memref<1x128xf32, #tpu.memory_space<vmem>>, vector<1x128xf32>
    %29 = vector.broadcast %28 : vector<1x128xf32> to vector<2x128xf32>
    %30 = arith.addf %27, %29 : vector<2x128xf32>
    %c0_23 = arith.constant 0 : index
    %c0_24 = arith.constant 0 : index
    %31 = vector.load %arg10[%c0_23, %c0_24] : memref<2x128xf32, #tpu.memory_space<vmem>>, vector<2x128xf32>
    tpu.vector_store %arg10[%c0_23, %c0_24], %30 {strides = array<i32>} : memref<2x128xf32, #tpu.memory_space<vmem>>, vector<2x128xf32>,
    return
  }
  func.func @transform_0(%arg0: i32) -> (i32, i32) {
    %c0_i32 = arith.constant 0 : i32
    %c0_i32_0 = arith.constant 0 : i32
    return %arg0, %c0_i32 : i32, i32
  }
  func.func @transform_1(%arg0: i32) -> (i32, i32) {
    %c0_i32 = arith.constant 0 : i32
    %c0_i32_0 = arith.constant 0 : i32
    %c0_i32_1 = arith.constant 0 : i32
    return %c0_i32, %c0_i32_0 : i32, i32
  }
  func.func @transform_2(%arg0: i32) -> (i32, i32) {
    %c0_i32 = arith.constant 0 : i32
    %c0_i32_0 = arith.constant 0 : i32
    %c0_i32_1 = arith.constant 0 : i32
    return %c0_i32, %c0_i32_0 : i32, i32
  }
  func.func @transform_3(%arg0: i32) -> (i32, i32) {
    %c0_i32 = arith.constant 0 : i32
    %c0_i32_0 = arith.constant 0 : i32
    %c0_i32_1 = arith.constant 0 : i32
    return %c0_i32, %c0_i32_0 : i32, i32
  }
  func.func @transform_4(%arg0: i32) -> (i32, i32) {
    %c0_i32 = arith.constant 0 : i32
    %c0_i32_0 = arith.constant 0 : i32
    %c0_i32_1 = arith.constant 0 : i32
    return %c0_i32, %c0_i32_0 : i32, i32
  }
  func.func @transform_5(%arg0: i32) -> (i32, i32) {
    %c0_i32 = arith.constant 0 : i32
    %c0_i32_0 = arith.constant 0 : i32
    %c0_i32_1 = arith.constant 0 : i32
    return %c0_i32, %c0_i32_0 : i32, i32
  }
  func.func @transform_6(%arg0: i32) -> (i32, i32) {
    %c0_i32 = arith.constant 0 : i32
    %c0_i32_0 = arith.constant 0 : i32
    %c0_i32_1 = arith.constant 0 : i32
    return %c0_i32, %c0_i32_0 : i32, i32
  }
  func.func @transform_7(%arg0: i32) -> (i32, i32) {
    %c0_i32 = arith.constant 0 : i32
    %c0_i32_0 = arith.constant 0 : i32
    %c0_i32_1 = arith.constant 0 : i32
    return %c0_i32, %c0_i32_0 : i32, i32
  }
  func.func @transform_8(%arg0: i32) -> (i32, i32) {
    %c0_i32 = arith.constant 0 : i32
    %c0_i32_0 = arith.constant 0 : i32
    %c0_i32_1 = arith.constant 0 : i32
    return %c0_i32, %c0_i32_0 : i32, i32
  }
  func.func @transform_9(%arg0: i32) -> (i32, i32) {
    %c0_i32 = arith.constant 0 : i32
    %c0_i32_0 = arith.constant 0 : i32
    return %arg0, %c0_i32 : i32, i32
  }
}

</mosaic_0001>

<llo_original>
// kernel: tpu_custom_call.1
$region0: #{tpu_custom_call.1}
  #allocation0 [shape = 'u32[]', space=smem, size = 0x4, offset = 0x4, fixed_abs, tag = 'smem constant byte address 0x4 - core index']
  #allocation1 [shape = 'u32[72,128]{1,0:T(1,128)}', space=vmem, size = 0x9000, scoped, tag = 'internal scratch']
  %s0 = inlined_call_operand.vmem [shape: f32[2,1024], index: 0, kind: input, shape index: {}]
  %s1 = inlined_call_operand.vmem [shape: bf16[1024,32], index: 1, kind: input, shape index: {}]
  %s2 = inlined_call_operand.vmem [shape: f32[1,32], index: 2, kind: input, shape index: {}]
  %s3 = inlined_call_operand.vmem [shape: bf16[32,16], index: 3, kind: input, shape index: {}]
  %s4 = inlined_call_operand.vmem [shape: f32[1,16], index: 4, kind: input, shape index: {}]
  %s5 = inlined_call_operand.vmem [shape: bf16[16,16], index: 5, kind: input, shape index: {}]
  %s6 = inlined_call_operand.vmem [shape: f32[1,16], index: 6, kind: input, shape index: {}]
  %s7 = inlined_call_operand.vmem [shape: bf16[16,128], index: 7, kind: input, shape index: {}]
  %s8 = inlined_call_operand.vmem [shape: f32[1,128], index: 8, kind: input, shape index: {}]
  %s9 = inlined_call_operand.hbm [shape: f32[2,128], index: 9, kind: output, shape index: {}]
  %s10 = sld [smem:[#allocation0]]
  $region46: #{tpu_custom_call.1} parent=0
    _
  %s12 = ssub.s32 1, %s10
  %s13 = scalar_select 0, %s12, %s10
  $region1: #{tpu_custom_call.1} parent=0
    #allocation2 [shape = 'u8[1024]{0}', space=vmem, size = 0x400, scoped, tag = 'output window, operand 0, single buffered']
    #allocation3 [shape = 's32[1]{0}', space=sflag, size = 0x4, scoped, tag = 'scoped memory for tpu_custom_call.1']
    %14 = vsyncpa [#allocation3], 0
    // Predicated region
    $region2: #{tpu_custom_call.1} parent=1 // pred_check
      _
    $region3: #{tpu_custom_call.1} parent=1 // pred_check_branch
      %16 = sbr.rel (0) target = $region5
    $region4: #{tpu_custom_call.1} parent=1 // pred_region
      _
    $region5: #{tpu_custom_call.1} parent=1 // pred_fallthru
      _
    // Predicated region
    $region6: #{tpu_custom_call.1} parent=1 // pred_check
      _
    $region7: #{tpu_custom_call.1} parent=1 // pred_check_branch
      %18 = sbr.rel (0) target = $region9
    $region8: #{tpu_custom_call.1} parent=1 // pred_region
      _
    $region9: #{tpu_custom_call.1} parent=1 // pred_fallthru
      _
    // Predicated region
    $region10: #{tpu_custom_call.1} parent=1 // pred_check
      _
    $region11: #{tpu_custom_call.1} parent=1 // pred_check_branch
      %20 = sbr.rel (0) target = $region13
    $region12: #{tpu_custom_call.1} parent=1 // pred_region
      _
    $region13: #{tpu_custom_call.1} parent=1 // pred_fallthru
      _
    // Predicated region
    $region14: #{tpu_custom_call.1} parent=1 // pred_check
      _
    $region15: #{tpu_custom_call.1} parent=1 // pred_check_branch
      %22 = sbr.rel (0) target = $region17
    $region16: #{tpu_custom_call.1} parent=1 // pred_region
      _
    $region17: #{tpu_custom_call.1} parent=1 // pred_fallthru
      _
    // Predicated region
    $region18: #{tpu_custom_call.1} parent=1 // pred_check
      _
    $region19: #{tpu_custom_call.1} parent=1 // pred_check_branch
      %24 = sbr.rel (0) target = $region21
    $region20: #{tpu_custom_call.1} parent=1 // pred_region
      _
    $region21: #{tpu_custom_call.1} parent=1 // pred_fallthru
      _
    // Predicated region
    $region22: #{tpu_custom_call.1} parent=1 // pred_check
      _
    $region23: #{tpu_custom_call.1} parent=1 // pred_check_branch
      %26 = sbr.rel (0) target = $region25
    $region24: #{tpu_custom_call.1} parent=1 // pred_region
      _
    $region25: #{tpu_custom_call.1} parent=1 // pred_fallthru
      _
    // Predicated region
    $region26: #{tpu_custom_call.1} parent=1 // pred_check
      _
    $region27: #{tpu_custom_call.1} parent=1 // pred_check_branch
      %28 = sbr.rel (0) target = $region29
    $region28: #{tpu_custom_call.1} parent=1 // pred_region
      _
    $region29: #{tpu_custom_call.1} parent=1 // pred_fallthru
      _
    // Predicated region
    $region30: #{tpu_custom_call.1} parent=1 // pred_check
      _
    $region31: #{tpu_custom_call.1} parent=1 // pred_check_branch
      %30 = sbr.rel (0) target = $region33
    $region32: #{tpu_custom_call.1} parent=1 // pred_region
      _
    $region33: #{tpu_custom_call.1} parent=1 // pred_fallthru
      _
    // Predicated region
    $region34: #{tpu_custom_call.1} parent=1 // pred_check
      _
    $region35: #{tpu_custom_call.1} parent=1 // pred_check_branch
      %32 = sbr.rel (0) target = $region37
    $region36: #{tpu_custom_call.1} parent=1 // pred_region
      _
    $region37: #{tpu_custom_call.1} parent=1 // pred_fallthru
      _
    %v34 = vld [vmem:[%s0] sm:$0xff]
    %v35 = vld [vmem:[%s0 + $0x8] sm:$0xff]
    %38 = vst [vmem:[#allocation1] ss:$4 sm:$0xff] %v34
    %s39 = scalar_lea.vmem [#allocation1], 32
    %40 = vst [vmem:[%s39] ss:$4 sm:$0xff] %v35
    %v41 = vld.sshfl [vmem:[#allocation1] sm:$0xff pattern:$0x73625140]
    %v42 = vld.sshfl [vmem:[#allocation1 + $0x8] sm:$0xff pattern:$0x73625140]
    %v43 = vld.sshfl [vmem:[#allocation1 + $0x10] sm:$0xff pattern:$0x73625140]
    %v44 = vld.sshfl [vmem:[#allocation1 + $0x18] sm:$0xff pattern:$0x73625140]
    %v45 = vld.sshfl [vmem:[#allocation1 + $0x20] sm:$0xff pattern:$0x73625140]
    %v46 = vld.sshfl [vmem:[#allocation1 + $0x28] sm:$0xff pattern:$0x73625140]
    %v47 = vld.sshfl [vmem:[#allocation1 + $0x30] sm:$0xff pattern:$0x73625140]
    %v48 = vld.sshfl [vmem:[#allocation1 + $0x38] sm:$0xff pattern:$0x73625140]
    %v57 = vpack.c.bf16 %v41, %v41
    %v58 = vpack.c.bf16 %v42, %v42
    %v59 = vpack.c.bf16 %v43, %v43
    %v60 = vpack.c.bf16 %v44, %v44
    %v61 = vpack.c.bf16 %v45, %v45
    %v62 = vpack.c.bf16 %v46, %v46
    %v63 = vpack.c.bf16 %v47, %v47
    %v64 = vpack.c.bf16 %v48, %v48
    %v65 = vld [vmem:[%s1] sm:$0xf]
    %v66 = vld [vmem:[%s1 + $0x4] sm:$0xf]
    %v67 = vld [vmem:[%s1 + $0x8] sm:$0xf]
    %v68 = vld [vmem:[%s1 + $0xc] sm:$0xf]
    %v69 = vld [vmem:[%s1 + $0x10] sm:$0xf]
    %v70 = vld [vmem:[%s1 + $0x14] sm:$0xf]
    %v71 = vld [vmem:[%s1 + $0x18] sm:$0xf]
    %v72 = vld [vmem:[%s1 + $0x1c] sm:$0xf]
    %v73 = vld [vmem:[%s1 + $0x20] sm:$0xf]
    %v74 = vld [vmem:[%s1 + $0x24] sm:$0xf]
    %v75 = vld [vmem:[%s1 + $0x28] sm:$0xf]
    %v76 = vld [vmem:[%s1 + $0x2c] sm:$0xf]
    %v77 = vld [vmem:[%s1 + $0x30] sm:$0xf]
    %v78 = vld [vmem:[%s1 + $0x34] sm:$0xf]
    %v79 = vld [vmem:[%s1 + $0x38] sm:$0xf]
    %v80 = vld [vmem:[%s1 + $0x3c] sm:$0xf]
    %v81 = vld [vmem:[%s1 + $0x40] sm:$0xf]
    %v82 = vld [vmem:[%s1 + $0x44] sm:$0xf]
    %v83 = vld [vmem:[%s1 + $0x48] sm:$0xf]
    %v84 = vld [vmem:[%s1 + $0x4c] sm:$0xf]
    %v85 = vld [vmem:[%s1 + $0x50] sm:$0xf]
    %v86 = vld [vmem:[%s1 + $0x54] sm:$0xf]
    %v87 = vld [vmem:[%s1 + $0x58] sm:$0xf]
    %v88 = vld [vmem:[%s1 + $0x5c] sm:$0xf]
    %v89 = vld [vmem:[%s1 + $0x60] sm:$0xf]
    %v90 = vld [vmem:[%s1 + $0x64] sm:$0xf]
    %v91 = vld [vmem:[%s1 + $0x68] sm:$0xf]
    %v92 = vld [vmem:[%s1 + $0x6c] sm:$0xf]
    %v93 = vld [vmem:[%s1 + $0x70] sm:$0xf]
    %v94 = vld [vmem:[%s1 + $0x74] sm:$0xf]
    %v95 = vld [vmem:[%s1 + $0x78] sm:$0xf]
    %v96 = vld [vmem:[%s1 + $0x7c] sm:$0xf]
    %v97 = vld [vmem:[%s1 + $0x80] sm:$0xf]
    %v98 = vld [vmem:[%s1 + $0x84] sm:$0xf]
    %v99 = vld [vmem:[%s1 + $0x88] sm:$0xf]
    %v100 = vld [vmem:[%s1 + $0x8c] sm:$0xf]
    %v101 = vld [vmem:[%s1 + $0x90] sm:$0xf]
    %v102 = vld [vmem:[%s1 + $0x94] sm:$0xf]
    %v103 = vld [vmem:[%s1 + $0x98] sm:$0xf]
    %v104 = vld [vmem:[%s1 + $0x9c] sm:$0xf]
    %v105 = vld [vmem:[%s1 + $0xa0] sm:$0xf]
    %v106 = vld [vmem:[%s1 + $0xa4] sm:$0xf]
    %v107 = vld [vmem:[%s1 + $0xa8] sm:$0xf]
    %v108 = vld [vmem:[%s1 + $0xac] sm:$0xf]
    %v109 = vld [vmem:[%s1 + $0xb0] sm:$0xf]
    %v110 = vld [vmem:[%s1 + $0xb4] sm:$0xf]
    %v111 = vld [vmem:[%s1 + $0xb8] sm:$0xf]
    %v112 = vld [vmem:[%s1 + $0xbc] sm:$0xf]
    %v113 = vld [vmem:[%s1 + $0xc0] sm:$0xf]
    %v114 = vld [vmem:[%s1 + $0xc4] sm:$0xf]
    %v115 = vld [vmem:[%s1 + $0xc8] sm:$0xf]
    %v116 = vld [vmem:[%s1 + $0xcc] sm:$0xf]
    %v117 = vld [vmem:[%s1 + $0xd0] sm:$0xf]
    %v118 = vld [vmem:[%s1 + $0xd4] sm:$0xf]
    %v119 = vld [vmem:[%s1 + $0xd8] sm:$0xf]
    %v120 = vld [vmem:[%s1 + $0xdc] sm:$0xf]
    %v121 = vld [vmem:[%s1 + $0xe0] sm:$0xf]
    %v122 = vld [vmem:[%s1 + $0xe4] sm:$0xf]
    %v123 = vld [vmem:[%s1 + $0xe8] sm:$0xf]
    %v124 = vld [vmem:[%s1 + $0xec] sm:$0xf]
    %v125 = vld [vmem:[%s1 + $0xf0] sm:$0xf]
    %v126 = vld [vmem:[%s1 + $0xf4] sm:$0xf]
    %v127 = vld [vmem:[%s1 + $0xf8] sm:$0xf]
    %v128 = vld [vmem:[%s1 + $0xfc] sm:$0xf]
    %v129 = vld [vmem:[%s1 + $0x100] sm:$0xf]
    %v130 = vld [vmem:[%s1 + $0x104] sm:$0xf]
    %v131 = vld [vmem:[%s1 + $0x108] sm:$0xf]
    %v132 = vld [vmem:[%s1 + $0x10c] sm:$0xf]
    %v133 = vld [vmem:[%s1 + $0x110] sm:$0xf]
    %v134 = vld [vmem:[%s1 + $0x114] sm:$0xf]
    %v135 = vld [vmem:[%s1 + $0x118] sm:$0xf]
    %v136 = vld [vmem:[%s1 + $0x11c] sm:$0xf]
    %v137 = vld [vmem:[%s1 + $0x120] sm:$0xf]
    %v138 = vld [vmem:[%s1 + $0x124] sm:$0xf]
    %v139 = vld [vmem:[%s1 + $0x128] sm:$0xf]
    %v140 = vld [vmem:[%s1 + $0x12c] sm:$0xf]
    %v141 = vld [vmem:[%s1 + $0x130] sm:$0xf]
    %v142 = vld [vmem:[%s1 + $0x134] sm:$0xf]
    %v143 = vld [vmem:[%s1 + $0x138] sm:$0xf]
    %v144 = vld [vmem:[%s1 + $0x13c] sm:$0xf]
    %v145 = vld [vmem:[%s1 + $0x140] sm:$0xf]
    %v146 = vld [vmem:[%s1 + $0x144] sm:$0xf]
    %v147 = vld [vmem:[%s1 + $0x148] sm:$0xf]
    %v148 = vld [vmem:[%s1 + $0x14c] sm:$0xf]
    %v149 = vld [vmem:[%s1 + $0x150] sm:$0xf]
    %v150 = vld [vmem:[%s1 + $0x154] sm:$0xf]
    %v151 = vld [vmem:[%s1 + $0x158] sm:$0xf]
    %v152 = vld [vmem:[%s1 + $0x15c] sm:$0xf]
    %v153 = vld [vmem:[%s1 + $0x160] sm:$0xf]
    %v154 = vld [vmem:[%s1 + $0x164] sm:$0xf]
    %v155 = vld [vmem:[%s1 + $0x168] sm:$0xf]
    %v156 = vld [vmem:[%s1 + $0x16c] sm:$0xf]
    %v157 = vld [vmem:[%s1 + $0x170] sm:$0xf]
    %v158 = vld [vmem:[%s1 + $0x174] sm:$0xf]
    %v159 = vld [vmem:[%s1 + $0x178] sm:$0xf]
    %v160 = vld [vmem:[%s1 + $0x17c] sm:$0xf]
    %v161 = vld [vmem:[%s1 + $0x180] sm:$0xf]
    %v162 = vld [vmem:[%s1 + $0x184] sm:$0xf]
    %v163 = vld [vmem:[%s1 + $0x188] sm:$0xf]
    %v164 = vld [vmem:[%s1 + $0x18c] sm:$0xf]
    %v165 = vld [vmem:[%s1 + $0x190] sm:$0xf]
    %v166 = vld [vmem:[%s1 + $0x194] sm:$0xf]
    %v167 = vld [vmem:[%s1 + $0x198] sm:$0xf]
    %v168 = vld [vmem:[%s1 + $0x19c] sm:$0xf]
    %v169 = vld [vmem:[%s1 + $0x1a0] sm:$0xf]
    %v170 = vld [vmem:[%s1 + $0x1a4] sm:$0xf]
    %v171 = vld [vmem:[%s1 + $0x1a8] sm:$0xf]
    %v172 = vld [vmem:[%s1 + $0x1ac] sm:$0xf]
    %v173 = vld [vmem:[%s1 + $0x1b0] sm:$0xf]
    %v174 = vld [vmem:[%s1 + $0x1b4] sm:$0xf]
    %v175 = vld [vmem:[%s1 + $0x1b8] sm:$0xf]
    %v176 = vld [vmem:[%s1 + $0x1bc] sm:$0xf]
    %v177 = vld [vmem:[%s1 + $0x1c0] sm:$0xf]
    %v178 = vld [vmem:[%s1 + $0x1c4] sm:$0xf]
    %v179 = vld [vmem:[%s1 + $0x1c8] sm:$0xf]
    %v180 = vld [vmem:[%s1 + $0x1cc] sm:$0xf]
    %v181 = vld [vmem:[%s1 + $0x1d0] sm:$0xf]
    %v182 = vld [vmem:[%s1 + $0x1d4] sm:$0xf]
    %v183 = vld [vmem:[%s1 + $0x1d8] sm:$0xf]
    %v184 = vld [vmem:[%s1 + $0x1dc] sm:$0xf]
    %v185 = vld [vmem:[%s1 + $0x1e0] sm:$0xf]
    %v186 = vld [vmem:[%s1 + $0x1e4] sm:$0xf]
    %v187 = vld [vmem:[%s1 + $0x1e8] sm:$0xf]
    %v188 = vld [vmem:[%s1 + $0x1ec] sm:$0xf]
    %v189 = vld [vmem:[%s1 + $0x1f0] sm:$0xf]
    %v190 = vld [vmem:[%s1 + $0x1f4] sm:$0xf]
    %v191 = vld [vmem:[%s1 + $0x1f8] sm:$0xf]
    %v192 = vld [vmem:[%s1 + $0x1fc] sm:$0xf]
    %v193 = vld [vmem:[%s2] sm:$0x1]
    %v195 = vperm.slane %v193, 0
    %v325 = vunpack.c.l.b16 %v65
    %v326 = vunpack.c.l.b16 %v66
    %v327 = vunpack.c.l.b16 %v67
    %v328 = vunpack.c.l.b16 %v68
    %v329 = vunpack.c.l.b16 %v69
    %v330 = vunpack.c.l.b16 %v70
    %v331 = vunpack.c.l.b16 %v71
    %v332 = vunpack.c.l.b16 %v72
    %v333 = vunpack.c.l.b16 %v73
    %v334 = vunpack.c.l.b16 %v74
    %v335 = vunpack.c.l.b16 %v75
    %v336 = vunpack.c.l.b16 %v76
    %v337 = vunpack.c.l.b16 %v77
    %v338 = vunpack.c.l.b16 %v78
    %v339 = vunpack.c.l.b16 %v79
    %v340 = vunpack.c.l.b16 %v80
    %v341 = vunpack.c.l.b16 %v81
    %v342 = vunpack.c.l.b16 %v82
    %v343 = vunpack.c.l.b16 %v83
    %v344 = vunpack.c.l.b16 %v84
    %v345 = vunpack.c.l.b16 %v85
    %v346 = vunpack.c.l.b16 %v86
    %v347 = vunpack.c.l.b16 %v87
    %v348 = vunpack.c.l.b16 %v88
    %v349 = vunpack.c.l.b16 %v89
    %v350 = vunpack.c.l.b16 %v90
    %v351 = vunpack.c.l.b16 %v91
    %v352 = vunpack.c.l.b16 %v92
    %v353 = vunpack.c.l.b16 %v93
    %v354 = vunpack.c.l.b16 %v94
    %v355 = vunpack.c.l.b16 %v95
    %v356 = vunpack.c.l.b16 %v96
    %v357 = vunpack.c.l.b16 %v97
    %v358 = vunpack.c.l.b16 %v98
    %v359 = vunpack.c.l.b16 %v99
    %v360 = vunpack.c.l.b16 %v100
    %v361 = vunpack.c.l.b16 %v101
    %v362 = vunpack.c.l.b16 %v102
    %v363 = vunpack.c.l.b16 %v103
    %v364 = vunpack.c.l.b16 %v104
    %v365 = vunpack.c.l.b16 %v105
    %v366 = vunpack.c.l.b16 %v106
    %v367 = vunpack.c.l.b16 %v107
    %v368 = vunpack.c.l.b16 %v108
    %v369 = vunpack.c.l.b16 %v109
    %v370 = vunpack.c.l.b16 %v110
    %v371 = vunpack.c.l.b16 %v111
    %v372 = vunpack.c.l.b16 %v112
    %v373 = vunpack.c.l.b16 %v113
    %v374 = vunpack.c.l.b16 %v114
    %v375 = vunpack.c.l.b16 %v115
    %v376 = vunpack.c.l.b16 %v116
    %v377 = vunpack.c.l.b16 %v117
    %v378 = vunpack.c.l.b16 %v118
    %v379 = vunpack.c.l.b16 %v119
    %v380 = vunpack.c.l.b16 %v120
    %v381 = vunpack.c.l.b16 %v121
    %v382 = vunpack.c.l.b16 %v122
    %v383 = vunpack.c.l.b16 %v123
    %v384 = vunpack.c.l.b16 %v124
    %v385 = vunpack.c.l.b16 %v125
    %v386 = vunpack.c.l.b16 %v126
    %v387 = vunpack.c.l.b16 %v127
    %v388 = vunpack.c.l.b16 %v128
    %v389 = vunpack.c.l.b16 %v129
    %v390 = vunpack.c.l.b16 %v130
    %v391 = vunpack.c.l.b16 %v131
    %v392 = vunpack.c.l.b16 %v132
    %v393 = vunpack.c.l.b16 %v133
    %v394 = vunpack.c.l.b16 %v134
    %v395 = vunpack.c.l.b16 %v135
    %v396 = vunpack.c.l.b16 %v136
    %v397 = vunpack.c.l.b16 %v137
    %v398 = vunpack.c.l.b16 %v138
    %v399 = vunpack.c.l.b16 %v139
    %v400 = vunpack.c.l.b16 %v140
    %v401 = vunpack.c.l.b16 %v141
    %v402 = vunpack.c.l.b16 %v142
    %v403 = vunpack.c.l.b16 %v143
    %v404 = vunpack.c.l.b16 %v144
    %v405 = vunpack.c.l.b16 %v145
    %v406 = vunpack.c.l.b16 %v146
    %v407 = vunpack.c.l.b16 %v147
    %v408 = vunpack.c.l.b16 %v148
    %v409 = vunpack.c.l.b16 %v149
    %v410 = vunpack.c.l.b16 %v150
    %v411 = vunpack.c.l.b16 %v151
    %v412 = vunpack.c.l.b16 %v152
    %v413 = vunpack.c.l.b16 %v153
    %v414 = vunpack.c.l.b16 %v154
    %v415 = vunpack.c.l.b16 %v155
    %v416 = vunpack.c.l.b16 %v156
    %v417 = vunpack.c.l.b16 %v157
    %v418 = vunpack.c.l.b16 %v158
    %v419 = vunpack.c.l.b16 %v159
    %v420 = vunpack.c.l.b16 %v160
    %v421 = vunpack.c.l.b16 %v161
    %v422 = vunpack.c.l.b16 %v162
    %v423 = vunpack.c.l.b16 %v163
    %v424 = vunpack.c.l.b16 %v164
    %v425 = vunpack.c.l.b16 %v165
    %v426 = vunpack.c.l.b16 %v166
    %v427 = vunpack.c.l.b16 %v167
    %v428 = vunpack.c.l.b16 %v168
    %v429 = vunpack.c.l.b16 %v169
    %v430 = vunpack.c.l.b16 %v170
    %v431 = vunpack.c.l.b16 %v171
    %v432 = vunpack.c.l.b16 %v172
    %v433 = vunpack.c.l.b16 %v173
    %v434 = vunpack.c.l.b16 %v174
    %v435 = vunpack.c.l.b16 %v175
    %v436 = vunpack.c.l.b16 %v176
    %v437 = vunpack.c.l.b16 %v177
    %v438 = vunpack.c.l.b16 %v178
    %v439 = vunpack.c.l.b16 %v179
    %v440 = vunpack.c.l.b16 %v180
    %v441 = vunpack.c.l.b16 %v181
    %v442 = vunpack.c.l.b16 %v182
    %v443 = vunpack.c.l.b16 %v183
    %v444 = vunpack.c.l.b16 %v184
    %v445 = vunpack.c.l.b16 %v185
    %v446 = vunpack.c.l.b16 %v186
    %v447 = vunpack.c.l.b16 %v187
    %v448 = vunpack.c.l.b16 %v188
    %v449 = vunpack.c.l.b16 %v189
    %v450 = vunpack.c.l.b16 %v190
    %v451 = vunpack.c.l.b16 %v191
    %v452 = vunpack.c.l.b16 %v192
    %v453 = vpack.c.b16 %v326, %v325
    %v454 = vpack.c.b16 %v328, %v327
    %v455 = vpack.c.b16 %v330, %v329
    %v456 = vpack.c.b16 %v332, %v331
    %v457 = vpack.c.b16 %v334, %v333
    %v458 = vpack.c.b16 %v336, %v335
    %v459 = vpack.c.b16 %v338, %v337
    %v460 = vpack.c.b16 %v340, %v339
    %v461 = vpack.c.b16 %v342, %v341
    %v462 = vpack.c.b16 %v344, %v343
    %v463 = vpack.c.b16 %v346, %v345
    %v464 = vpack.c.b16 %v348, %v347
    %v465 = vpack.c.b16 %v350, %v349
    %v466 = vpack.c.b16 %v352, %v351
    %v467 = vpack.c.b16 %v354, %v353
    %v468 = vpack.c.b16 %v356, %v355
    %v469 = vpack.c.b16 %v358, %v357
    %v470 = vpack.c.b16 %v360, %v359
    %v471 = vpack.c.b16 %v362, %v361
    %v472 = vpack.c.b16 %v364, %v363
    %v473 = vpack.c.b16 %v366, %v365
    %v474 = vpack.c.b16 %v368, %v367
    %v475 = vpack.c.b16 %v370, %v369
    %v476 = vpack.c.b16 %v372, %v371
    %v477 = vpack.c.b16 %v374, %v373
    %v478 = vpack.c.b16 %v376, %v375
    %v479 = vpack.c.b16 %v378, %v377
    %v480 = vpack.c.b16 %v380, %v379
    %v481 = vpack.c.b16 %v382, %v381
    %v482 = vpack.c.b16 %v384, %v383
    %v483 = vpack.c.b16 %v386, %v385
    %v484 = vpack.c.b16 %v388, %v387
    %v485 = vpack.c.b16 %v390, %v389
    %v486 = vpack.c.b16 %v392, %v391
    %v487 = vpack.c.b16 %v394, %v393
    %v488 = vpack.c.b16 %v396, %v395
    %v489 = vpack.c.b16 %v398, %v397
    %v490 = vpack.c.b16 %v400, %v399
    %v491 = vpack.c.b16 %v402, %v401
    %v492 = vpack.c.b16 %v404, %v403
    %v493 = vpack.c.b16 %v406, %v405
    %v494 = vpack.c.b16 %v408, %v407
    %v495 = vpack.c.b16 %v410, %v409
    %v496 = vpack.c.b16 %v412, %v411
    %v497 = vpack.c.b16 %v414, %v413
    %v498 = vpack.c.b16 %v416, %v415
    %v499 = vpack.c.b16 %v418, %v417
    %v500 = vpack.c.b16 %v420, %v419
    %v501 = vpack.c.b16 %v422, %v421
    %v502 = vpack.c.b16 %v424, %v423
    %v503 = vpack.c.b16 %v426, %v425
    %v504 = vpack.c.b16 %v428, %v427
    %v505 = vpack.c.b16 %v430, %v429
    %v506 = vpack.c.b16 %v432, %v431
    %v507 = vpack.c.b16 %v434, %v433
    %v508 = vpack.c.b16 %v436, %v435
    %v509 = vpack.c.b16 %v438, %v437
    %v510 = vpack.c.b16 %v440, %v439
    %v511 = vpack.c.b16 %v442, %v441
    %v512 = vpack.c.b16 %v444, %v443
    %v513 = vpack.c.b16 %v446, %v445
    %v514 = vpack.c.b16 %v448, %v447
    %v515 = vpack.c.b16 %v450, %v449
    %v516 = vpack.c.b16 %v452, %v451
    %581 = vmatpush.bf16.msra.mxu0 %v460
    %582 = vmatpush.bf16.msra.mxu0 %v459
    %583 = vmatpush.bf16.msra.mxu0 %v458
    %584 = vmatpush.bf16.msra.mxu0 %v457
    %585 = vmatpush.bf16.msra.mxu0 %v456
    %586 = vmatpush.bf16.msra.mxu0 %v455
    %587 = vmatpush.bf16.msra.mxu0 %v454
    %588 = vmatpush.bf16.msra.mxu0 %v453
    %589 = vmatmul.bf16.gmra.mxu0 %v57
    %v590 = vpop.f32.mrf.mxu0
    %v591 = vadd.f32 %v195, %v590
    %v592 = vpop.f32.mrf.mxu0
    %593 = vdwg.mxu0
    %594 = vmatpush.bf16.msra.mxu0 %v468
    %595 = vmatpush.bf16.msra.mxu0 %v467
    %596 = vmatpush.bf16.msra.mxu0 %v466
    %597 = vmatpush.bf16.msra.mxu0 %v465
    %598 = vmatpush.bf16.msra.mxu0 %v464
    %599 = vmatpush.bf16.msra.mxu0 %v463
    %600 = vmatpush.bf16.msra.mxu0 %v462
    %601 = vmatpush.bf16.msra.mxu0 %v461
    %602 = vmatmul.bf16.gmra.mxu0 %v58
    %v603 = vpop.f32.mrf.mxu0
    %v604 = vadd.f32 %v591, %v603
    %v605 = vpop.f32.mrf.mxu0
    %606 = vdwg.mxu0
    %607 = vmatpush.bf16.msra.mxu0 %v476
    %608 = vmatpush.bf16.msra.mxu0 %v475
    %609 = vmatpush.bf16.msra.mxu0 %v474
    %610 = vmatpush.bf16.msra.mxu0 %v473
    %611 = vmatpush.bf16.msra.mxu0 %v472
    %612 = vmatpush.bf16.msra.mxu0 %v471
    %613 = vmatpush.bf16.msra.mxu0 %v470
    %614 = vmatpush.bf16.msra.mxu0 %v469
    %615 = vmatmul.bf16.gmra.mxu0 %v59
    %v616 = vpop.f32.mrf.mxu0
    %v617 = vadd.f32 %v604, %v616
    %v618 = vpop.f32.mrf.mxu0
    %619 = vdwg.mxu0
    %620 = vmatpush.bf16.msra.mxu0 %v484
    %621 = vmatpush.bf16.msra.mxu0 %v483
    %622 = vmatpush.bf16.msra.mxu0 %v482
    %623 = vmatpush.bf16.msra.mxu0 %v481
    %624 = vmatpush.bf16.msra.mxu0 %v480
    %625 = vmatpush.bf16.msra.mxu0 %v479
    %626 = vmatpush.bf16.msra.mxu0 %v478
    %627 = vmatpush.bf16.msra.mxu0 %v477
    %628 = vmatmul.bf16.gmra.mxu0 %v60
    %v629 = vpop.f32.mrf.mxu0
    %v630 = vadd.f32 %v617, %v629
    %v631 = vpop.f32.mrf.mxu0
    %632 = vdwg.mxu0
    %633 = vmatpush.bf16.msra.mxu0 %v492
    %634 = vmatpush.bf16.msra.mxu0 %v491
    %635 = vmatpush.bf16.msra.mxu0 %v490
    %636 = vmatpush.bf16.msra.mxu0 %v489
    %637 = vmatpush.bf16.msra.mxu0 %v488
    %638 = vmatpush.bf16.msra.mxu0 %v487
    %639 = vmatpush.bf16.msra.mxu0 %v486
    %640 = vmatpush.bf16.msra.mxu0 %v485
    %641 = vmatmul.bf16.gmra.mxu0 %v61
    %v642 = vpop.f32.mrf.mxu0
    %v643 = vadd.f32 %v630, %v642
    %v644 = vpop.f32.mrf.mxu0
    %645 = vdwg.mxu0
    %646 = vmatpush.bf16.msra.mxu0 %v500
    %647 = vmatpush.bf16.msra.mxu0 %v499
    %648 = vmatpush.bf16.msra.mxu0 %v498
    %649 = vmatpush.bf16.msra.mxu0 %v497
    %650 = vmatpush.bf16.msra.mxu0 %v496
    %651 = vmatpush.bf16.msra.mxu0 %v495
    %652 = vmatpush.bf16.msra.mxu0 %v494
    %653 = vmatpush.bf16.msra.mxu0 %v493
    %654 = vmatmul.bf16.gmra.mxu0 %v62
    %v655 = vpop.f32.mrf.mxu0
    %v656 = vadd.f32 %v643, %v655
    %v657 = vpop.f32.mrf.mxu0
    %658 = vdwg.mxu0
    %659 = vmatpush.bf16.msra.mxu0 %v508
    %660 = vmatpush.bf16.msra.mxu0 %v507
    %661 = vmatpush.bf16.msra.mxu0 %v506
    %662 = vmatpush.bf16.msra.mxu0 %v505
    %663 = vmatpush.bf16.msra.mxu0 %v504
    %664 = vmatpush.bf16.msra.mxu0 %v503
    %665 = vmatpush.bf16.msra.mxu0 %v502
    %666 = vmatpush.bf16.msra.mxu0 %v501
    %667 = vmatmul.bf16.gmra.mxu0 %v63
    %v668 = vpop.f32.mrf.mxu0
    %v669 = vadd.f32 %v656, %v668
    %v670 = vpop.f32.mrf.mxu0
    %671 = vdwg.mxu0
    %672 = vmatpush.bf16.msra.mxu0 %v516
    %673 = vmatpush.bf16.msra.mxu0 %v515
    %674 = vmatpush.bf16.msra.mxu0 %v514
    %675 = vmatpush.bf16.msra.mxu0 %v513
    %676 = vmatpush.bf16.msra.mxu0 %v512
    %677 = vmatpush.bf16.msra.mxu0 %v511
    %678 = vmatpush.bf16.msra.mxu0 %v510
    %679 = vmatpush.bf16.msra.mxu0 %v509
    %680 = vmatmul.bf16.gmra.mxu0 %v64
    %v681 = vpop.f32.mrf.mxu0
    %v682 = vadd.f32 %v669, %v681
    %v683 = vpop.f32.mrf.mxu0
    %684 = vdwg.mxu0
    %v685 = vmax.f32 %v682, 0.0
    %v686 = vpack.c.bf16 %v685, %v685
    %v687 = vld [vmem:[%s3] sm:$0xf]
    %v688 = vld [vmem:[%s3 + $0x4] sm:$0xf]
    %v689 = vld [vmem:[%s3 + $0x8] sm:$0xf]
    %v690 = vld [vmem:[%s3 + $0xc] sm:$0xf]
    %v691 = vld [vmem:[%s4] sm:$0x1]
    %v693 = vperm.slane %v691, 0
    %v699 = vunpack.c.l.b16 %v687
    %v700 = vunpack.c.l.b16 %v688
    %v701 = vunpack.c.l.b16 %v689
    %v702 = vunpack.c.l.b16 %v690
    %v703 = vpack.c.b16 %v700, %v699
    %v704 = vpack.c.b16 %v702, %v701
    %vm707 = vcmask 261120
    %v709 = vsel %vm707, %v686, 0
    %711 = vmatpush.bf16.msra.mxu0 0
    %712 = vmatpush.bf16.msra.mxu0 0
    %713 = vmatpush.bf16.msra.mxu0 0
    %714 = vmatpush.bf16.msra.mxu0 0
    %715 = vmatpush.bf16.msra.mxu0 0
    %716 = vmatpush.bf16.msra.mxu0 0
    %717 = vmatpush.bf16.msra.mxu0 %v704
    %718 = vmatpush.bf16.msra.mxu0 %v703
    %719 = vmatmul.bf16.gmra.mxu0 %v709
    %v720 = vpop.f32.mrf.mxu0
    %v721 = vadd.f32 %v693, %v720
    %v722 = vpop.f32.mrf.mxu0
    %723 = vdwg.mxu0
    %v724 = vmax.f32 %v721, 0.0
    %v725 = vpack.c.bf16 %v724, %v724
    %v726 = vld [vmem:[%s5] sm:$0xf]
    %v727 = vld [vmem:[%s5 + $0x4] sm:$0xf]
    %v728 = vld [vmem:[%s6] sm:$0x1]
    %v730 = vperm.slane %v728, 0
    %v734 = vunpack.c.l.b16 %v726
    %v735 = vunpack.c.l.b16 %v727
    %v736 = vpack.c.b16 %v735, %v734
    %vm738 = vcmask 130048
    %v740 = vsel %vm738, %v725, 0
    %742 = vmatpush.bf16.msra.mxu0 0
    %743 = vmatpush.bf16.msra.mxu0 0
    %744 = vmatpush.bf16.msra.mxu0 0
    %745 = vmatpush.bf16.msra.mxu0 0
    %746 = vmatpush.bf16.msra.mxu0 0
    %747 = vmatpush.bf16.msra.mxu0 0
    %748 = vmatpush.bf16.msra.mxu0 0
    %749 = vmatpush.bf16.msra.mxu0 %v736
    %750 = vmatmul.bf16.gmra.mxu0 %v740
    %v751 = vpop.f32.mrf.mxu0
    %v752 = vadd.f32 %v730, %v751
    %v753 = vpop.f32.mrf.mxu0
    %754 = vdwg.mxu0
    %v755 = vmax.f32 %v752, 0.0
    %v756 = vpack.c.bf16 %v755, %v755
    %v757 = vld [vmem:[%s7] sm:$0xf]
    %v758 = vld [vmem:[%s7 + $0x4] sm:$0xf]
    %v759 = vld [vmem:[%s8] sm:$0x1]
    %v761 = vperm.slane %v759, 0
    %v765 = vunpack.c.l.b16 %v757
    %v766 = vunpack.c.l.b16 %v758
    %v767 = vpack.c.b16 %v766, %v765
    %v770 = vsel %vm738, %v756, 0
    %772 = vmatpush.bf16.msra.mxu0 0
    %773 = vmatpush.bf16.msra.mxu0 0
    %774 = vmatpush.bf16.msra.mxu0 0
    %775 = vmatpush.bf16.msra.mxu0 0
    %776 = vmatpush.bf16.msra.mxu0 0
    %777 = vmatpush.bf16.msra.mxu0 0
    %778 = vmatpush.bf16.msra.mxu0 0
    %779 = vmatpush.bf16.msra.mxu0 %v767
    %780 = vmatmul.bf16.gmra.mxu0 %v770
    %v781 = vpop.f32.mrf.mxu0
    %v782 = vadd.f32 %v761, %v781
    %v783 = vpop.f32.mrf.mxu0
    %784 = vdwg.mxu0
    %785 = vst [vmem:[#allocation2] sm:$0x3] %v782
    // Predicated region
    $region38: #{tpu_custom_call.1} parent=1 // pred_check
      _
    $region39: #{tpu_custom_call.1} parent=1 // pred_check_branch
      %787 = sbr.rel (0) target = $region41
    $region40: #{tpu_custom_call.1} parent=1 // pred_region
      %789 = vsyncadd [#allocation3], 0
      %s791 = sshll.u32 [#allocation2], 4
      %s792 = int_to_ptr.vmem [resolvable:$true] %s791
      %s793 = sshll.u32 %s9, 4
      %s794 = int_to_ptr.hbm [resolvable:$true] %s793
      %796 = dma.vmem_to_hbm [thread:$0]  %s792, 32, %s794, [#allocation3]
    $region41: #{tpu_custom_call.1} parent=1 // pred_fallthru
      _
    // Predicated region
    $region42: #{tpu_custom_call.1} parent=1 // pred_check
      _
    $region43: #{tpu_custom_call.1} parent=1 // pred_check_branch
      %798 = sbr.rel (0) target = $region45
    $region44: #{tpu_custom_call.1} parent=1 // pred_region
      %800 = dma.done [#allocation3], 32
    $region45: #{tpu_custom_call.1} parent=1 // pred_fallthru
      _
    %801 = vsyncpa [#allocation3], 1

</llo_original>
